<compile_context>
chip_gen: v7x
topology: tpu7x:2x2x1
jax: 0.10.0
libtpu: 0.0.40
codegen_flags: <defaults>
</compile_context>

<pallas_src>
import functools

import jax
import jax.numpy as jnp
from jax import lax
from jax.experimental import pallas as pl
from jax.experimental.pallas import tpu as pltpu


def _round_up(n, m):
    return ((n + m - 1) // m) * m


def mlp_kernel(x_ref, w1T_ref, b1_ref, w2_ref, b2_ref, oT_ref):
    """One batch tile.

    x_ref  : (TB, F)    original row-major batch tile, streamed from HBM
    w1T_ref: (H_pad, F) layer-1 weights, transposed, VMEM-resident
    b1_ref : (H_pad, 1) layer-1 bias (f32), VMEM-resident
    w2_ref : (8, H_pad) layer-2 weights in row 0, rows 1..7 zero (f32)
    b2_ref : (1, 1)     layer-2 bias (f32)
    oT_ref : (1, TB)    lane-dense output tile (f32)
    """
    # Layer 1 on the MXU: contract F directly against the (TB, F) tile
    # (no host-side transpose / extra HBM pass over x).  f32 accumulation.
    x = x_ref[...].astype(w1T_ref.dtype)
    hT = lax.dot_general(
        w1T_ref[...], x,
        dimension_numbers=(((1,), (1,)), ((), ())),
        preferred_element_type=jnp.float32)             # (H_pad, TB)
    hT = jnp.maximum(hT + b1_ref[...], 0.0)              # bias + ReLU (VPU)
    # Layer 2 on the (otherwise idle) MXU instead of a VPU multiply + reduce.
    out8 = jnp.dot(w2_ref[...], hT,
                   preferred_element_type=jnp.float32)   # (8, TB), row 0 valid
    oT_ref[...] = (out8[0:1, :] + b2_ref[...]).astype(oT_ref.dtype)


def prepare_params(w1, b1, w2, b2):
    """One-time repacking of torch-layout params into kernel layout.

    w1:(F,H)  b1:(1,H) or (H,)  w2:(H,O)  b2:(1,O) or (O,).  Specialized to O == 1.
    """
    F, H = w1.shape
    O = jnp.reshape(w2, (H, -1)).shape[1]
    assert O == 1, "Pallas kernel specialized for n_output == 1"
    # TODO(synk): add a (TB, O) MXU output path for n_output >= 8.
    H_pad = _round_up(H, 8)   # hidden lives on the sublane axis -> 8-alignment
    w1T = jnp.zeros((H_pad, F), w1.dtype).at[:H, :].set(w1.T)
    b1c = jnp.zeros((H_pad, 1), jnp.float32).at[:H, :].set(
        jnp.reshape(b1, (H, 1)).astype(jnp.float32))
    w2c = jnp.zeros((8, H_pad), jnp.float32).at[0, :H].set(
        jnp.reshape(w2, (H,)).astype(jnp.float32))
    b2c = jnp.reshape(b2, (1, 1)).astype(jnp.float32)
    return w1T, b1c, w2c, b2c


@functools.partial(jax.jit, static_argnames=("block_b",))
def my_model_forward(x, params, *, block_b=4096):
    """x: (B, F) activations; params: output of prepare_params."""
    w1T, b1c, w2c, b2c = params
    B, F = x.shape
    H_pad = w1T.shape[0]

    # Batch tile size (batch sits on the lane axis of the output).
    if B > 128:
        # At least 2 grid steps so "parallel" shards across both v7x TCs,
        # capped at block_b (per-tile VMEM is a few MB -> safe on v7x).
        tb = min(block_b, _round_up(pl.cdiv(B, 2), 128))
    else:
        tb = _round_up(max(B, 1), 8)

    x_in = x
    if tb > B:  # only for tiny/unaligned batches: pad a handful of rows
        x_in = jnp.pad(x, ((0, tb - B), (0, 0)))
    num_tiles = pl.cdiv(x_in.shape[0], tb)
    # The last tile may read past the end of x (Pallas pads out-of-bounds
    # reads); padded batch columns never mix with valid ones and are sliced off.

    outT = pl.pallas_call(
        mlp_kernel,
        out_shape=jax.ShapeDtypeStruct((1, num_tiles * tb), jnp.float32),
        grid_spec=pltpu.PrefetchScalarGridSpec(
            num_scalar_prefetch=0,
            grid=(num_tiles,),
            in_specs=[
                pl.BlockSpec((tb, F), lambda i: (i, 0)),        # x batch tile
                pl.BlockSpec((H_pad, F), lambda i: (0, 0)),     # W1^T (resident)
                pl.BlockSpec((H_pad, 1), lambda i: (0, 0)),     # b1   (resident)
                pl.BlockSpec((8, H_pad), lambda i: (0, 0)),     # W2   (resident)
                pl.BlockSpec((1, 1), lambda i: (0, 0)),         # b2   (resident)
            ],
            out_specs=pl.BlockSpec((1, tb), lambda i: (0, i)),  # lane-dense out
        ),
        compiler_params=pltpu.CompilerParams(
            dimension_semantics=("parallel",),  # megacore sharding on v7x
        ),
    )(x_in, w1T, b1c, w2c, b2c)

    return outT[0, :B].reshape(B, 1)


def init_params(key, n_feature, n_hidden, n_output):
    # Deterministic init mimicking torch.nn.Linear default (uniform +/- 1/sqrt(fan_in)).
    k1, k2, k3, k4 = jax.random.split(key, 4)
    lim1 = 1.0 / jnp.sqrt(jnp.float32(n_feature))
    lim2 = 1.0 / jnp.sqrt(jnp.float32(n_hidden))
    w1 = jax.random.uniform(k1, (n_feature, n_hidden), jnp.float32, -lim1, lim1)
    b1 = jax.random.uniform(k2, (1, n_hidden), jnp.float32, -lim1, lim1)
    w2 = jax.random.uniform(k3, (n_hidden, n_output), jnp.float32, -lim2, lim2)
    b2 = jax.random.uniform(k4, (1, n_output), jnp.float32, -lim2, lim2)
    return w1, b1, w2, b2


if __name__ == "__main__":
    # Boston-housing-style shapes: 13 features -> 100 hidden -> 1 output.
    n_feature, n_hidden, n_output = 13, 100, 1
    key = jax.random.PRNGKey(0)
    kx, kp = jax.random.split(key)
    w1, b1, w2, b2 = init_params(kp, n_feature, n_hidden, n_output)

    # One-time parameter repacking (hoisted out of the per-call path).
    params_f32 = prepare_params(w1, b1, w2, b2)

    # 1) Small batch, f32 params: check against a plain-JAX reference.
    x_small = jax.random.normal(kx, (8, n_feature), jnp.float32)
    out = jax.block_until_ready(my_model_forward(x_small, params_f32))
    ref = jnp.maximum(x_small @ w1 + b1, 0.0) @ w2 + b2
    assert out.shape == (8, n_output)
    assert jnp.allclose(out, ref, atol=1e-4, rtol=1e-4)

    # 2) Larger batch exercising the multi-tile grid (two tiles on the
    #    "parallel" axis) with bf16 layer-1 MXU operands, f32 accumulation.
    x_big = jax.random.normal(jax.random.PRNGKey(1), (1000, n_feature), jnp.float32)
    params_bf16 = prepare_params(w1.astype(jnp.bfloat16), b1, w2, b2)
    out_big = jax.block_until_ready(my_model_forward(x_big, params_bf16))
    hid_ref = jnp.maximum(
        jnp.dot(x_big.astype(jnp.bfloat16), w1.astype(jnp.bfloat16),
                preferred_element_type=jnp.float32) + b1, 0.0)
    ref_big = hid_ref @ w2 + b2
    assert out_big.shape == (1000, n_output)
    assert jnp.allclose(out_big, ref_big, atol=1e-2, rtol=1e-2)

    print("KERNEL_OK")
</pallas_src>

<mosaic_0001>
module attributes {stable_mosaic.version = 11 : i64} {
  func.func @mlp_kernel(%arg0: i32, %arg1: memref<8x13xf32, #tpu.memory_space<vmem>>, %arg2: memref<104x13xf32, #tpu.memory_space<vmem>>, %arg3: memref<104x1xf32, #tpu.memory_space<vmem>>, %arg4: memref<8x104xf32, #tpu.memory_space<vmem>>, %arg5: memref<1x1xf32, #tpu.memory_space<vmem>>, %arg6: memref<1x8xf32, #tpu.memory_space<vmem>>) attributes {dimension_semantics = [#tpu.dimension_semantics<parallel>], iteration_bounds = array<i64: 1>, scalar_prefetch = 0 : i64, scratch_operands = 0 : i64, tpu.core_type = #tpu.core_type<tc>, window_params = [{transform_indices = @transform_0, window_bounds = array<i64: 8, 13>}, {pipeline_mode = #tpu.pipeline_mode<synchronous>, transform_indices = @transform_1, window_bounds = array<i64: 104, 13>}, {pipeline_mode = #tpu.pipeline_mode<synchronous>, transform_indices = @transform_2, window_bounds = array<i64: 104, 1>}, {pipeline_mode = #tpu.pipeline_mode<synchronous>, transform_indices = @transform_3, window_bounds = array<i64: 8, 104>}, {pipeline_mode = #tpu.pipeline_mode<synchronous>, transform_indices = @transform_4, window_bounds = array<i64: 1, 1>}, {transform_indices = @transform_5, window_bounds = array<i64: 1, 8>}]} {
    %c0 = arith.constant 0 : index
    %c0_0 = arith.constant 0 : index
    %0 = vector.load %arg1[%c0, %c0_0] : memref<8x13xf32, #tpu.memory_space<vmem>>, vector<8x13xf32>
    %c0_1 = arith.constant 0 : index
    %c0_2 = arith.constant 0 : index
    %1 = vector.load %arg2[%c0_1, %c0_2] : memref<104x13xf32, #tpu.memory_space<vmem>>, vector<104x13xf32>
    %cst = arith.constant dense<0.000000e+00> : vector<104x8xf32>
    %2 = tpu.matmul %1, %0, %cst {dimension_numbers = #tpu.dot_dimension_numbers<[1], [1], [0], [0], [0, 0, 1, 0], [], []>} : vector<104x13xf32>, vector<8x13xf32>, vector<104x8xf32> -> vector<104x8xf32>
    %c0_3 = arith.constant 0 : index
    %c0_4 = arith.constant 0 : index
    %3 = vector.load %arg3[%c0_3, %c0_4] : memref<104x1xf32, #tpu.memory_space<vmem>>, vector<104x1xf32>
    %4 = vector.broadcast %3 : vector<104x1xf32> to vector<104x8xf32>
    %5 = arith.addf %2, %4 : vector<104x8xf32>
    %cst_5 = arith.constant 0.000000e+00 : f32
    %6 = vector.broadcast %cst_5 : f32 to vector<104x8xf32>
    %7 = arith.maximumf %5, %6 : vector<104x8xf32>
    %c0_6 = arith.constant 0 : index
    %c0_7 = arith.constant 0 : index
    %8 = vector.load %arg4[%c0_6, %c0_7] : memref<8x104xf32, #tpu.memory_space<vmem>>, vector<8x104xf32>
    %cst_8 = arith.constant dense<0.000000e+00> : vector<8x8xf32>
    %9 = tpu.matmul %8, %7, %cst_8 {dimension_numbers = #tpu.dot_dimension_numbers<[1], [0], [0], [1], [0, 0, 1, 1], [], []>} : vector<8x104xf32>, vector<104x8xf32>, vector<8x8xf32> -> vector<8x8xf32>
    %10 = vector.extract_strided_slice %9 {offsets = [0, 0], sizes = [1, 8], strides = [1, 1]} : vector<8x8xf32> to vector<1x8xf32>
    %c0_9 = arith.constant 0 : index
    %c0_10 = arith.constant 0 : index
    %11 = vector.load %arg5[%c0_9, %c0_10] : memref<1x1xf32, #tpu.memory_space<vmem>>, vector<1x1xf32>
    %12 = vector.broadcast %11 : vector<1x1xf32> to vector<1x8xf32>
    %13 = arith.addf %10, %12 : vector<1x8xf32>
    %c0_11 = arith.constant 0 : index
    %c0_12 = arith.constant 0 : index
    %14 = vector.load %arg6[%c0_11, %c0_12] : memref<1x8xf32, #tpu.memory_space<vmem>>, vector<1x8xf32>
    tpu.vector_store %arg6[%c0_11, %c0_12], %13 {strides = array<i32>} : memref<1x8xf32, #tpu.memory_space<vmem>>, vector<1x8xf32>,
    return
  }
  func.func @transform_0(%arg0: i32) -> (i32, i32) {
    %c0_i32 = arith.constant 0 : i32
    %c0_i32_0 = arith.constant 0 : i32
    return %arg0, %c0_i32 : i32, i32
  }
  func.func @transform_1(%arg0: i32) -> (i32, i32) {
    %c0_i32 = arith.constant 0 : i32
    %c0_i32_0 = arith.constant 0 : i32
    %c0_i32_1 = arith.constant 0 : i32
    return %c0_i32, %c0_i32_0 : i32, i32
  }
  func.func @transform_2(%arg0: i32) -> (i32, i32) {
    %c0_i32 = arith.constant 0 : i32
    %c0_i32_0 = arith.constant 0 : i32
    %c0_i32_1 = arith.constant 0 : i32
    return %c0_i32, %c0_i32_0 : i32, i32
  }
  func.func @transform_3(%arg0: i32) -> (i32, i32) {
    %c0_i32 = arith.constant 0 : i32
    %c0_i32_0 = arith.constant 0 : i32
    %c0_i32_1 = arith.constant 0 : i32
    return %c0_i32, %c0_i32_0 : i32, i32
  }
  func.func @transform_4(%arg0: i32) -> (i32, i32) {
    %c0_i32 = arith.constant 0 : i32
    %c0_i32_0 = arith.constant 0 : i32
    %c0_i32_1 = arith.constant 0 : i32
    return %c0_i32, %c0_i32_0 : i32, i32
  }
  func.func @transform_5(%arg0: i32) -> (i32, i32) {
    %c0_i32 = arith.constant 0 : i32
    %c0_i32_0 = arith.constant 0 : i32
    return %c0_i32, %arg0 : i32, i32
  }
}

</mosaic_0001>

<llo_original>
// kernel: my_model_forward.1
$region0: #{my_model_forward.1}
  #allocation0 [shape = 'u32[]', space=smem, size = 0x4, offset = 0x4, fixed_abs, tag = 'smem constant byte address 0x4 - core index']
  #allocation1 [shape = 'u32[144,128]{1,0:T(1,128)}', space=vmem, size = 0x12000, scoped, tag = 'internal scratch']
  #allocation2 [shape = 'f32[1,1]{1,0:T(1,128)S(1)}', space=vmem, size = 0x200, scoped, tag = 'scoped memory for my_model_forward.1']
  %s0 = inlined_call_operand.vmem [shape: f32[8,13], index: 0, kind: input, shape index: {}]
  %s1 = inlined_call_operand.vmem [shape: f32[104,13], index: 1, kind: input, shape index: {}]
  %s2 = inlined_call_operand.vmem [shape: f32[104,1], index: 2, kind: input, shape index: {}]
  %s3 = inlined_call_operand.vmem [shape: f32[8,104], index: 3, kind: input, shape index: {}]
  %s4 = inlined_call_operand.<no memory space> [shape: f32[1,1], index: 4, kind: input, shape index: {}]
  %s5 = inlined_call_operand.hbm [shape: f32[1,8], index: 5, kind: output, shape index: {}]
  %s6 = sld [smem:[#allocation0]]
  $region30: #{my_model_forward.1} parent=0
    _
  %s8 = ssub.s32 1, %s6
  %s9 = scalar_select 0, %s8, %s6
  %v10 = vstv %s4
  %11 = vst [vmem:[#allocation2] sm:$0x1] %v10
  $region1: #{my_model_forward.1} parent=0
    #allocation3 [shape = 'u8[512]{0}', space=vmem, size = 0x400, scoped, tag = 'output window, operand 0, single buffered']
    #allocation4 [shape = 's32[1]{0}', space=sflag, size = 0x4, scoped, tag = 'scoped memory for my_model_forward.1']
    %12 = vsyncpa [#allocation4], 0
    // Predicated region
    $region2: #{my_model_forward.1} parent=1 // pred_check
      _
    $region3: #{my_model_forward.1} parent=1 // pred_check_branch
      %14 = sbr.rel (0) target = $region5
    $region4: #{my_model_forward.1} parent=1 // pred_region
      _
    $region5: #{my_model_forward.1} parent=1 // pred_fallthru
      _
    // Predicated region
    $region6: #{my_model_forward.1} parent=1 // pred_check
      _
    $region7: #{my_model_forward.1} parent=1 // pred_check_branch
      %16 = sbr.rel (0) target = $region9
    $region8: #{my_model_forward.1} parent=1 // pred_region
      _
    $region9: #{my_model_forward.1} parent=1 // pred_fallthru
      _
    // Predicated region
    $region10: #{my_model_forward.1} parent=1 // pred_check
      _
    $region11: #{my_model_forward.1} parent=1 // pred_check_branch
      %18 = sbr.rel (0) target = $region13
    $region12: #{my_model_forward.1} parent=1 // pred_region
      _
    $region13: #{my_model_forward.1} parent=1 // pred_fallthru
      _
    // Predicated region
    $region14: #{my_model_forward.1} parent=1 // pred_check
      _
    $region15: #{my_model_forward.1} parent=1 // pred_check_branch
      %20 = sbr.rel (0) target = $region17
    $region16: #{my_model_forward.1} parent=1 // pred_region
      _
    $region17: #{my_model_forward.1} parent=1 // pred_fallthru
      _
    // Predicated region
    $region18: #{my_model_forward.1} parent=1 // pred_check
      _
    $region19: #{my_model_forward.1} parent=1 // pred_check_branch
      %22 = sbr.rel (0) target = $region21
    $region20: #{my_model_forward.1} parent=1 // pred_region
      _
    $region21: #{my_model_forward.1} parent=1 // pred_fallthru
      _
    %v23 = vld [vmem:[%s0] sm:$0xff]
    %v24 = vld [vmem:[%s1] sm:$0xff]
    %v25 = vld [vmem:[%s1 + $0x8] sm:$0xff]
    %v26 = vld [vmem:[%s1 + $0x10] sm:$0xff]
    %v27 = vld [vmem:[%s1 + $0x18] sm:$0xff]
    %v28 = vld [vmem:[%s1 + $0x20] sm:$0xff]
    %v29 = vld [vmem:[%s1 + $0x28] sm:$0xff]
    %v30 = vld [vmem:[%s1 + $0x30] sm:$0xff]
    %v31 = vld [vmem:[%s1 + $0x38] sm:$0xff]
    %v32 = vld [vmem:[%s1 + $0x40] sm:$0xff]
    %v33 = vld [vmem:[%s1 + $0x48] sm:$0xff]
    %v34 = vld [vmem:[%s1 + $0x50] sm:$0xff]
    %v35 = vld [vmem:[%s1 + $0x58] sm:$0xff]
    %v36 = vld [vmem:[%s1 + $0x60] sm:$0xff]
    %v37 = vld [vmem:[%s2] sm:$0xff]
    %v38 = vld [vmem:[%s2 + $0x8] sm:$0xff]
    %v39 = vld [vmem:[%s2 + $0x10] sm:$0xff]
    %v40 = vld [vmem:[%s2 + $0x18] sm:$0xff]
    %v41 = vld [vmem:[%s2 + $0x20] sm:$0xff]
    %v42 = vld [vmem:[%s2 + $0x28] sm:$0xff]
    %v43 = vld [vmem:[%s2 + $0x30] sm:$0xff]
    %v44 = vld [vmem:[%s2 + $0x38] sm:$0xff]
    %v45 = vld [vmem:[%s2 + $0x40] sm:$0xff]
    %v46 = vld [vmem:[%s2 + $0x48] sm:$0xff]
    %v47 = vld [vmem:[%s2 + $0x50] sm:$0xff]
    %v48 = vld [vmem:[%s2 + $0x58] sm:$0xff]
    %v49 = vld [vmem:[%s2 + $0x60] sm:$0xff]
    %51 = vset.pattern.permute.xlu0 0
    %52 = vperm.xlu0 %51, %v37
    %v53 = vpop.permute.xlu0 %52
    %56 = vset.pattern.permute.xlu0 0
    %57 = vperm.xlu0 %56, %v38
    %v58 = vpop.permute.xlu0 %57
    %61 = vset.pattern.permute.xlu0 0
    %62 = vperm.xlu0 %61, %v39
    %v63 = vpop.permute.xlu0 %62
    %66 = vset.pattern.permute.xlu0 0
    %67 = vperm.xlu0 %66, %v40
    %v68 = vpop.permute.xlu0 %67
    %71 = vset.pattern.permute.xlu0 0
    %72 = vperm.xlu0 %71, %v41
    %v73 = vpop.permute.xlu0 %72
    %76 = vset.pattern.permute.xlu0 0
    %77 = vperm.xlu0 %76, %v42
    %v78 = vpop.permute.xlu0 %77
    %81 = vset.pattern.permute.xlu0 0
    %82 = vperm.xlu0 %81, %v43
    %v83 = vpop.permute.xlu0 %82
    %86 = vset.pattern.permute.xlu0 0
    %87 = vperm.xlu0 %86, %v44
    %v88 = vpop.permute.xlu0 %87
    %91 = vset.pattern.permute.xlu0 0
    %92 = vperm.xlu0 %91, %v45
    %v93 = vpop.permute.xlu0 %92
    %96 = vset.pattern.permute.xlu0 0
    %97 = vperm.xlu0 %96, %v46
    %v98 = vpop.permute.xlu0 %97
    %101 = vset.pattern.permute.xlu0 0
    %102 = vperm.xlu0 %101, %v47
    %v103 = vpop.permute.xlu0 %102
    %106 = vset.pattern.permute.xlu0 0
    %107 = vperm.xlu0 %106, %v48
    %v108 = vpop.permute.xlu0 %107
    %111 = vset.pattern.permute.xlu0 0
    %112 = vperm.xlu0 %111, %v49
    %v113 = vpop.permute.xlu0 %112
    %vm115 = vcmask 105472
    %v117 = vsel %vm115, %v24, 0
    %v120 = vsel %vm115, %v25, 0
    %v123 = vsel %vm115, %v26, 0
    %v126 = vsel %vm115, %v27, 0
    %v129 = vsel %vm115, %v28, 0
    %v132 = vsel %vm115, %v29, 0
    %v135 = vsel %vm115, %v30, 0
    %v138 = vsel %vm115, %v31, 0
    %v141 = vsel %vm115, %v32, 0
    %v144 = vsel %vm115, %v33, 0
    %v147 = vsel %vm115, %v34, 0
    %v150 = vsel %vm115, %v35, 0
    %v153 = vsel %vm115, %v36, 0
    %v156 = vsel %vm115, %v23, 0
    %158 = vmatprep.subr.mxu0 0.0
    %159 = vmatpush1.xpose.msra.mxu0 %v156
    %160 = vmatprep.subr.mxu0 0.0
    %161 = vmatpush1.xpose.msra.mxu0 0.0
    %162 = vmatprep.subr.mxu0 0.0
    %163 = vmatpush1.xpose.msra.mxu0 0.0
    %164 = vmatprep.subr.mxu0 0.0
    %165 = vmatpush1.xpose.msra.mxu0 0.0
    %166 = vmatprep.subr.mxu0 0.0
    %167 = vmatpush1.xpose.msra.mxu0 0.0
    %168 = vmatprep.subr.mxu0 0.0
    %169 = vmatpush1.xpose.msra.mxu0 0.0
    %170 = vmatprep.subr.mxu0 0.0
    %171 = vmatpush1.xpose.msra.mxu0 0.0
    %172 = vmatprep.subr.mxu0 0.0
    %173 = vmatpush1.xpose.msra.mxu0 0.0
    %174 = vmatprep.subr.mxu0 0.0
    %175 = vmatpush1.xpose.msra.mxu0 0.0
    %176 = vmatprep.subr.mxu0 0.0
    %177 = vmatpush1.xpose.msra.mxu0 0.0
    %178 = vmatprep.subr.mxu0 0.0
    %179 = vmatpush1.xpose.msra.mxu0 0.0
    %180 = vmatprep.subr.mxu0 0.0
    %181 = vmatpush1.xpose.msra.mxu0 0.0
    %182 = vmatprep.subr.mxu0 0.0
    %183 = vmatpush1.xpose.msra.mxu0 0.0
    %184 = vmatprep.subr.mxu0 0.0
    %185 = vmatpush1.xpose.msra.mxu0 0.0
    %186 = vmatprep.subr.mxu0 0.0
    %187 = vmatpush1.xpose.msra.mxu0 0.0
    %188 = vmatprep.subr.mxu0 0.0
    %189 = vmatpush1.xpose.msra.mxu0 0.0
    %190 = vmatprep.subr.mxu0 0.0
    %191 = vmatpush1.xpose.msra.mxu0 0.0
    %192 = vmatprep.subr.mxu0 0.0
    %193 = vmatpush1.xpose.msra.mxu0 0.0
    %194 = vmatprep.subr.mxu0 0.0
    %195 = vmatpush1.xpose.msra.mxu0 0.0
    %196 = vmatprep.subr.mxu0 0.0
    %197 = vmatpush1.xpose.msra.mxu0 0.0
    %198 = vmatprep.subr.mxu0 0.0
    %199 = vmatpush1.xpose.msra.mxu0 0.0
    %200 = vmatprep.subr.mxu0 0.0
    %201 = vmatpush1.xpose.msra.mxu0 0.0
    %202 = vmatprep.subr.mxu0 0.0
    %203 = vmatpush1.xpose.msra.mxu0 0.0
    %204 = vmatprep.subr.mxu0 0.0
    %205 = vmatpush1.xpose.msra.mxu0 0.0
    %206 = vmatprep.subr.mxu0 0.0
    %207 = vmatpush1.xpose.msra.mxu0 0.0
    %208 = vmatprep.subr.mxu0 0.0
    %209 = vmatpush1.xpose.msra.mxu0 0.0
    %210 = vmatprep.subr.mxu0 0.0
    %211 = vmatpush1.xpose.msra.mxu0 0.0
    %212 = vmatprep.subr.mxu0 0.0
    %213 = vmatpush1.xpose.msra.mxu0 0.0
    %214 = vmatprep.subr.mxu0 0.0
    %215 = vmatpush1.xpose.msra.mxu0 0.0
    %216 = vmatprep.subr.mxu0 0.0
    %217 = vmatpush1.xpose.msra.mxu0 0.0
    %218 = vmatprep.subr.mxu0 0.0
    %219 = vmatpush1.xpose.msra.mxu0 0.0
    %220 = vmatprep.subr.mxu0 0.0
    %221 = vmatpush1.xpose.msra.mxu0 0.0
    %222 = vmatprep.mubr.f32.mxu0 0.0
    %223 = vmatmul.mubr.f32.gmra.mrb[0].mxu0 %v117
    %v224 = vpop.f32.mrb[0].mxu0
    %v225 = vadd.f32 %v53, %v224
    %v226 = vpop.f32.mrb[0].mxu0
    %227 = vmatprep.mubr.f32.mxu0 0.0
    %228 = vmatmul.mubr.f32.gmra.mrb[0].mxu0 %v120
    %v229 = vpop.f32.mrb[0].mxu0
    %v230 = vadd.f32 %v58, %v229
    %v231 = vpop.f32.mrb[0].mxu0
    %232 = vmatprep.mubr.f32.mxu0 0.0
    %233 = vmatmul.mubr.f32.gmra.mrb[0].mxu0 %v123
    %v234 = vpop.f32.mrb[0].mxu0
    %v235 = vadd.f32 %v63, %v234
    %v236 = vpop.f32.mrb[0].mxu0
    %237 = vmatprep.mubr.f32.mxu0 0.0
    %238 = vmatmul.mubr.f32.gmra.mrb[0].mxu0 %v126
    %v239 = vpop.f32.mrb[0].mxu0
    %v240 = vadd.f32 %v68, %v239
    %v241 = vpop.f32.mrb[0].mxu0
    %242 = vmatprep.mubr.f32.mxu0 0.0
    %243 = vmatmul.mubr.f32.gmra.mrb[0].mxu0 %v129
    %v244 = vpop.f32.mrb[0].mxu0
    %v245 = vadd.f32 %v73, %v244
    %v246 = vpop.f32.mrb[0].mxu0
    %247 = vmatprep.mubr.f32.mxu0 0.0
    %248 = vmatmul.mubr.f32.gmra.mrb[0].mxu0 %v132
    %v249 = vpop.f32.mrb[0].mxu0
    %v250 = vadd.f32 %v78, %v249
    %v251 = vpop.f32.mrb[0].mxu0
    %252 = vmatprep.mubr.f32.mxu0 0.0
    %253 = vmatmul.mubr.f32.gmra.mrb[0].mxu0 %v135
    %v254 = vpop.f32.mrb[0].mxu0
    %v255 = vadd.f32 %v83, %v254
    %v256 = vpop.f32.mrb[0].mxu0
    %257 = vmatprep.mubr.f32.mxu0 0.0
    %258 = vmatmul.mubr.f32.gmra.mrb[0].mxu0 %v138
    %v259 = vpop.f32.mrb[0].mxu0
    %v260 = vadd.f32 %v88, %v259
    %v261 = vpop.f32.mrb[0].mxu0
    %262 = vmatprep.mubr.f32.mxu0 0.0
    %263 = vmatmul.mubr.f32.gmra.mrb[0].mxu0 %v141
    %v264 = vpop.f32.mrb[0].mxu0
    %v265 = vadd.f32 %v93, %v264
    %v266 = vpop.f32.mrb[0].mxu0
    %267 = vmatprep.mubr.f32.mxu0 0.0
    %268 = vmatmul.mubr.f32.gmra.mrb[0].mxu0 %v144
    %v269 = vpop.f32.mrb[0].mxu0
    %v270 = vadd.f32 %v98, %v269
    %v271 = vpop.f32.mrb[0].mxu0
    %272 = vmatprep.mubr.f32.mxu0 0.0
    %273 = vmatmul.mubr.f32.gmra.mrb[0].mxu0 %v147
    %v274 = vpop.f32.mrb[0].mxu0
    %v275 = vadd.f32 %v103, %v274
    %v276 = vpop.f32.mrb[0].mxu0
    %277 = vmatprep.mubr.f32.mxu0 0.0
    %278 = vmatmul.mubr.f32.gmra.mrb[0].mxu0 %v150
    %v279 = vpop.f32.mrb[0].mxu0
    %v280 = vadd.f32 %v108, %v279
    %v281 = vpop.f32.mrb[0].mxu0
    %282 = vmatprep.mubr.f32.mxu0 0.0
    %283 = vmatmul.mubr.f32.gmra.mrb[0].mxu0 %v153
    %v284 = vpop.f32.mrb[0].mxu0
    %v285 = vadd.f32 %v113, %v284
    %v286 = vpop.f32.mrb[0].mxu0
    %287 = vdwg.mxu0
    %v288 = vmax.f32 %v225, 0.0
    %v289 = vmax.f32 %v230, 0.0
    %v290 = vmax.f32 %v235, 0.0
    %v291 = vmax.f32 %v240, 0.0
    %v292 = vmax.f32 %v245, 0.0
    %v293 = vmax.f32 %v250, 0.0
    %v294 = vmax.f32 %v255, 0.0
    %v295 = vmax.f32 %v260, 0.0
    %v296 = vmax.f32 %v265, 0.0
    %v297 = vmax.f32 %v270, 0.0
    %v298 = vmax.f32 %v275, 0.0
    %v299 = vmax.f32 %v280, 0.0
    %v300 = vmax.f32 %v285, 0.0
    %v301 = vld [vmem:[%s3] sm:$0xff]
    %vm302 = vcmask 850944
    %v304 = vsel %vm302, %v301, 0
    %306 = vmatprep.subr.mxu0 0.0
    %307 = vmatpush1.msra.mxu0 %v288
    %308 = vmatprep.subr.mxu0 0.0
    %309 = vmatpush1.msra.mxu0 %v289
    %310 = vmatprep.subr.mxu0 0.0
    %311 = vmatpush1.msra.mxu0 %v290
    %312 = vmatprep.subr.mxu0 0.0
    %313 = vmatpush1.msra.mxu0 %v291
    %314 = vmatprep.subr.mxu0 0.0
    %315 = vmatpush1.msra.mxu0 %v292
    %316 = vmatprep.subr.mxu0 0.0
    %317 = vmatpush1.msra.mxu0 %v293
    %318 = vmatprep.subr.mxu0 0.0
    %319 = vmatpush1.msra.mxu0 %v294
    %320 = vmatprep.subr.mxu0 0.0
    %321 = vmatpush1.msra.mxu0 %v295
    %322 = vmatprep.subr.mxu0 0.0
    %323 = vmatpush1.msra.mxu0 %v296
    %324 = vmatprep.subr.mxu0 0.0
    %325 = vmatpush1.msra.mxu0 %v297
    %326 = vmatprep.subr.mxu0 0.0
    %327 = vmatpush1.msra.mxu0 %v298
    %328 = vmatprep.subr.mxu0 0.0
    %329 = vmatpush1.msra.mxu0 %v299
    %330 = vmatprep.subr.mxu0 0.0
    %331 = vmatpush1.msra.mxu0 %v300
    %332 = vmatprep.subr.mxu0 0.0
    %333 = vmatpush1.msra.mxu0 0.0
    %334 = vmatprep.subr.mxu0 0.0
    %335 = vmatpush1.msra.mxu0 0.0
    %336 = vmatprep.subr.mxu0 0.0
    %337 = vmatpush1.msra.mxu0 0.0
    %338 = vmatprep.subr.mxu0 0.0
    %339 = vmatpush1.msra.mxu0 0.0
    %340 = vmatprep.subr.mxu0 0.0
    %341 = vmatpush1.msra.mxu0 0.0
    %342 = vmatprep.subr.mxu0 0.0
    %343 = vmatpush1.msra.mxu0 0.0
    %344 = vmatprep.subr.mxu0 0.0
    %345 = vmatpush1.msra.mxu0 0.0
    %346 = vmatprep.subr.mxu0 0.0
    %347 = vmatpush1.msra.mxu0 0.0
    %348 = vmatprep.subr.mxu0 0.0
    %349 = vmatpush1.msra.mxu0 0.0
    %350 = vmatprep.subr.mxu0 0.0
    %351 = vmatpush1.msra.mxu0 0.0
    %352 = vmatprep.subr.mxu0 0.0
    %353 = vmatpush1.msra.mxu0 0.0
    %354 = vmatprep.subr.mxu0 0.0
    %355 = vmatpush1.msra.mxu0 0.0
    %356 = vmatprep.subr.mxu0 0.0
    %357 = vmatpush1.msra.mxu0 0.0
    %358 = vmatprep.subr.mxu0 0.0
    %359 = vmatpush1.msra.mxu0 0.0
    %360 = vmatprep.subr.mxu0 0.0
    %361 = vmatpush1.msra.mxu0 0.0
    %362 = vmatprep.subr.mxu0 0.0
    %363 = vmatpush1.msra.mxu0 0.0
    %364 = vmatprep.subr.mxu0 0.0
    %365 = vmatpush1.msra.mxu0 0.0
    %366 = vmatprep.subr.mxu0 0.0
    %367 = vmatpush1.msra.mxu0 0.0
    %368 = vmatprep.subr.mxu0 0.0
    %369 = vmatpush1.msra.mxu0 0.0
    %370 = vmatprep.mubr.f32.mxu0 0.0
    %371 = vmatmul.mubr.f32.gmra.mrb[0].mxu0 %v304
    %v372 = vpop.f32.mrb[0].mxu0
    %v373 = vadd.f32 0.0, %v372
    %v374 = vpop.f32.mrb[0].mxu0
    %375 = vdwg.mxu0
    %v376 = vld [vmem:[#allocation2] sm:$0x1]
    %378 = vset.pattern.permute.xlu0 0
    %379 = vperm.xlu0 %378, %v376
    %v380 = vpop.permute.xlu0 %379
    %v382 = vlaneseq
    %v383 = vshrl.u32 %v382, 7
    %v384 = vsub.s32 0, %v383
    %v385 = vrot.slane %v380, %v384
    %v386 = vadd.f32 %v373, %v385
    %vm387 = vcmask 57344
    %388 = vst.msk [vmem:[#allocation3] sm:$0x1] %vm387, %v386
    // Predicated region
    $region22: #{my_model_forward.1} parent=1 // pred_check
      _
    $region23: #{my_model_forward.1} parent=1 // pred_check_branch
      %390 = sbr.rel (0) target = $region25
    $region24: #{my_model_forward.1} parent=1 // pred_region
      %s392 = ssub.s32 16, 16
      %393 = vsyncadd [#allocation4], %s392
      %s395 = sshll.u32 [#allocation3], 4
      %s396 = int_to_ptr.vmem [resolvable:$true] %s395
      %398 = dma.vmem_to_hbm [thread:$0]  %s396, 16, %s5, [#allocation4]
    $region25: #{my_model_forward.1} parent=1 // pred_fallthru
      _
    // Predicated region
    $region26: #{my_model_forward.1} parent=1 // pred_check
      _
    $region27: #{my_model_forward.1} parent=1 // pred_check_branch
      %400 = sbr.rel (0) target = $region29
    $region28: #{my_model_forward.1} parent=1 // pred_region
      %401 = dma.done [#allocation4], 16
    $region29: #{my_model_forward.1} parent=1 // pred_fallthru
      _
    %402 = vsyncpa [#allocation4], 1

</llo_original>
